<compile_context>
chip_gen: v5e
topology: v5e:2x2
jax: 0.10.0
libtpu: 0.0.40
codegen_flags: <defaults>
</compile_context>

<pallas_src>
import functools
import math

import jax
import jax.numpy as jnp
from jax.experimental import pallas as pl
from jax.experimental.pallas import tpu as pltpu


_NEG_INF = -1e30

# Conservative per-kernel VMEM working-set budget (bytes).  v7x has 64 MiB per
# TensorCore (v5e/v6e have 128 MiB), so 40 MiB of tiles + a 56 MiB scoped limit
# leaves headroom on every generation.
_VMEM_TILE_BUDGET = 40 * 1024 * 1024
_VMEM_LIMIT_BYTES = 56 * 1024 * 1024


def _round_up(n, m):
    return ((n + m - 1) // m) * m


# ---------------------------------------------------------------------------
# Pallas kernel: one (batch-tile, seq-tile) step of fused mean -> fc -> softmax
# ---------------------------------------------------------------------------

def gate_kernel(x_ref, w_ref, b_ref, o_ref, acc_ref, *, inv_t, seq_len, tile_t):
    """x_ref: (TB, TT, Df)  w_ref: (Df, Ep)  b_ref: (1, Ep)  o_ref: (TB, Ep)
    acc_ref: (TB, Df) f32 running sum over the (folded) sequence axis.

    Ep is the expert dim padded to a multiple of 128; padded lanes carry zero
    weights and -1e30 bias, so exp(pad) == 0 and the softmax over the real
    experts is unchanged.
    """
    t = pl.program_id(1)

    @pl.when(t == 0)
    def _init():
        acc_ref[...] = jnp.zeros_like(acc_ref)

    x = x_ref[...].astype(jnp.float32)                      # (TB, TT, Df)
    if seq_len % tile_t != 0:
        # Final seq block is partial: zero the out-of-range rows before summing.
        seq_idx = t * tile_t + jax.lax.broadcasted_iota(jnp.int32, x.shape, 1)
        x = jnp.where(seq_idx < seq_len, x, 0.0)
    acc_ref[...] += jnp.sum(x, axis=1)                       # partial seq sum

    @pl.when(t == pl.num_programs(1) - 1)
    def _finalize():
        x_avg = acc_ref[...] * inv_t                         # mean over the ORIGINAL T
        logits = jnp.dot(x_avg, w_ref[...],
                         preferred_element_type=jnp.float32) + b_ref[...]
        m = jnp.max(logits, axis=-1, keepdims=True)
        e = jnp.exp(logits - m)                              # padded experts -> exp(-1e30) = 0
        s = jnp.sum(e, axis=-1, keepdims=True)
        o_ref[...] = e * (1.0 / s)                           # one divide per row


# ---------------------------------------------------------------------------
# Tiling / parameter prep / wrapper
# ---------------------------------------------------------------------------

def _choose_tiles(batch, seq_len, feat, experts_p, x_itemsize, force_tile_t=None):
    """Largest (tile_b, tile_t) whose double-buffered working set fits the budget."""
    tile_b = min(_round_up(batch, 8), 256)        # x DMA dominates; >256 only helps MXU fill
    while True:
        fixed = (2 * feat * experts_p * 4         # weights (pipeline double-buffers them)
                 + 2 * 8 * experts_p * 4          # bias (sublane-padded)
                 + 2 * tile_b * experts_p * 4     # output
                 + tile_b * feat * 4)             # f32 accumulator scratch
        per_step = 2 * tile_b * feat * x_itemsize  # double-buffered x bytes per seq step
        avail = _VMEM_TILE_BUDGET - fixed
        if tile_b == 8 or avail >= per_step * min(seq_len, 8):
            break
        tile_b = max(8, ((tile_b // 2) // 8) * 8)
    max_t = avail // per_step if avail > 0 else 0
    if force_tile_t is not None:
        tile_t = min(force_tile_t, seq_len)       # test hook; multiple of 8 or == seq_len
    elif max_t >= seq_len:
        tile_t = seq_len                          # whole sequence in one step
    else:
        tile_t = max(8, (max_t // 8) * 8)
    return tile_b, tile_t


def prepare_gate_params(w, b):
    """Hoisted parameter prep (call once): transpose + pad the fc layer.

    w : (E, D) float  (PyTorch nn.Linear weight layout),  b : (E,)
    Returns (w_t, b_p): w_t (D, Ep) f32, b_p (1, Ep) f32, Ep = round_up(E, 128).
    Padded expert lanes get zero weight and -1e30 bias so they softmax to 0.
    """
    E, D = w.shape
    Ep = _round_up(max(E, 128), 128)
    w_t = jnp.zeros((D, Ep), jnp.float32).at[:, :E].set(w.T.astype(jnp.float32))
    b_p = jnp.full((1, Ep), _NEG_INF, jnp.float32).at[0, :E].set(b.astype(jnp.float32))
    return w_t, b_p


@functools.partial(jax.jit, static_argnames=("num_experts", "force_tile_t"))
def gate_forward_prepared(x, w_t, b_p, *, num_experts, force_tile_t=None):
    """x: (B, T, D) float32/bf16; (w_t, b_p) from prepare_gate_params -> (B, E)."""
    B, T, D = x.shape
    Ep = w_t.shape[-1]
    itemsize = jnp.dtype(x.dtype).itemsize

    # Lane-fold small feature dims (pure row-major reshape, no copy).
    k = 1
    if D < 128 and 128 % D == 0 and T % (128 // D) == 0:
        k = 128 // D
    Tf, Df = T // k, D * k
    x_f = x.reshape(B, Tf, Df) if k > 1 else x
    w_f = jnp.tile(w_t, (k, 1)) if k > 1 else w_t            # (Df, Ep): fold-sum == T-sum

    tile_b, tile_t = _choose_tiles(B, Tf, Df, Ep, itemsize, force_tile_t)
    grid = (pl.cdiv(B, tile_b), pl.cdiv(Tf, tile_t))

    kernel = functools.partial(gate_kernel, inv_t=1.0 / T, seq_len=Tf, tile_t=tile_t)

    out_p = pl.pallas_call(
        kernel,
        out_shape=jax.ShapeDtypeStruct((B, Ep), jnp.float32),
        grid=grid,
        in_specs=[
            pl.BlockSpec((tile_b, tile_t, Df), lambda i, t: (i, t, 0)),  # streamed x
            pl.BlockSpec((Df, Ep), lambda i, t: (0, 0)),                 # resident weight
            pl.BlockSpec((1, Ep), lambda i, t: (0, 0)),                  # resident bias
        ],
        out_specs=pl.BlockSpec((tile_b, Ep), lambda i, t: (i, 0)),
        scratch_shapes=[pltpu.VMEM((tile_b, Df), jnp.float32)],          # seq-sum accumulator
        compiler_params=pltpu.CompilerParams(
            dimension_semantics=("parallel", "arbitrary"),               # batch ||, seq reduce
            vmem_limit_bytes=_VMEM_LIMIT_BYTES,
        ),
    )(x_f, w_f, b_p)

    return out_p[:, :num_experts]


def gate_forward(x, w, b):
    """GateNetwork.forward: softmax(mean(x, axis=1) @ w.T + b)."""
    w_t, b_p = prepare_gate_params(w, b)
    return gate_forward_prepared(x, w_t, b_p, num_experts=int(w.shape[0]))


# ---------------------------------------------------------------------------
# Deterministic parameter init (mirrors nn.Linear) and pure-JAX reference
# ---------------------------------------------------------------------------

def init_params(key, input_dim, num_experts):
    k = 1.0 / math.sqrt(input_dim)
    k1, k2 = jax.random.split(key)
    w = jax.random.uniform(k1, (num_experts, input_dim), jnp.float32, -k, k)
    b = jax.random.uniform(k2, (num_experts,), jnp.float32, -k, k)
    return w, b


def reference_forward(x, w, b):
    x_avg = jnp.mean(x, axis=1)
    logits = jnp.dot(x_avg, w.T, precision=jax.lax.Precision.HIGHEST) + b
    return jax.nn.softmax(logits, axis=-1)


# ---------------------------------------------------------------------------

if __name__ == "__main__":
    def check(B, T, D, E, key, **fwd_kwargs):
        kx, kp = jax.random.split(key)
        x = jax.random.normal(kx, (B, T, D), jnp.float32)
        w, b = init_params(kp, D, E)
        if fwd_kwargs:
            w_t, b_p = prepare_gate_params(w, b)
            out = gate_forward_prepared(x, w_t, b_p, num_experts=E, **fwd_kwargs)
        else:
            out = gate_forward(x, w, b)
        out = jax.block_until_ready(out)
        ref = reference_forward(x, w, b)
        assert out.shape == (B, E), (out.shape, (B, E))
        assert jnp.allclose(out, ref, atol=1e-5, rtol=1e-5), (out, ref)
        assert jnp.allclose(jnp.sum(out, axis=-1), 1.0, atol=1e-5)

    key = jax.random.PRNGKey(0)
    keys = jax.random.split(key, 4)

    # Module-sized shapes: batch=2, seq=8, input_dim=16, experts=4 (lane-folded path).
    check(2, 8, 16, 4, keys[0])
    # Larger batch tile, D=64 lane-folded by 2, padded expert lanes.
    check(24, 16, 64, 8, keys[1])
    # Non-foldable D, seq not a multiple of 8, partial batch block (rows masked on write).
    check(4, 10, 48, 3, keys[2])
    # Force the multi-step sequence grid + tail mask + VMEM accumulator path.
    check(16, 40, 64, 6, keys[3], force_tile_t=8)

    print("KERNEL_OK")
</pallas_src>

<mosaic_0001>
module attributes {stable_mosaic.version = 11 : i64} {
  func.func @gate_kernel(%arg0: i32, %arg1: i32, %arg2: memref<8x1x128xf32, #tpu.memory_space<vmem>>, %arg3: memref<128x128xf32, #tpu.memory_space<vmem>>, %arg4: memref<1x128xf32, #tpu.memory_space<vmem>>, %arg5: memref<8x128xf32, #tpu.memory_space<vmem>>, %arg6: memref<8x128xf32, #tpu.memory_space<vmem>>) attributes {dimension_semantics = [#tpu.dimension_semantics<parallel>, #tpu.dimension_semantics<arbitrary>], iteration_bounds = array<i64: 1, 1>, scalar_prefetch = 0 : i64, scratch_operands = 1 : i64, tpu.core_type = #tpu.core_type<tc>, window_params = [{transform_indices = @transform_0, window_bounds = array<i64: 8, 1, 128>}, {pipeline_mode = #tpu.pipeline_mode<synchronous>, transform_indices = @transform_1, window_bounds = array<i64: 128, 128>}, {pipeline_mode = #tpu.pipeline_mode<synchronous>, transform_indices = @transform_2, window_bounds = array<i64: 1, 128>}, {transform_indices = @transform_3, window_bounds = array<i64: 8, 128>}]} {
    %c0_i32 = arith.constant 0 : i32
    %0 = arith.cmpi eq, %arg1, %c0_i32 : i32
    %1 = arith.extui %0 : i1 to i32
    %c0_i32_0 = arith.constant 0 : i32
    %2 = arith.cmpi ne, %1, %c0_i32_0 : i32
    scf.if %2 {
      %cst_9 = arith.constant 0.000000e+00 : f32
      %11 = vector.broadcast %cst_9 : f32 to vector<8x128xf32>
      %c0_10 = arith.constant 0 : index
      %c0_11 = arith.constant 0 : index
      %12 = vector.load %arg6[%c0_10, %c0_11] : memref<8x128xf32, #tpu.memory_space<vmem>>, vector<8x128xf32>
      tpu.vector_store %arg6[%c0_10, %c0_11], %11 {strides = array<i32>} : memref<8x128xf32, #tpu.memory_space<vmem>>, vector<8x128xf32>,
    } else {
    }
    %c0 = arith.constant 0 : index
    %c0_1 = arith.constant 0 : index
    %c0_2 = arith.constant 0 : index
    %3 = vector.load %arg2[%c0, %c0_1, %c0_2] : memref<8x1x128xf32, #tpu.memory_space<vmem>>, vector<8x1x128xf32>
    %c0_3 = arith.constant 0 : index
    %c0_4 = arith.constant 0 : index
    %4 = vector.load %arg6[%c0_3, %c0_4] : memref<8x128xf32, #tpu.memory_space<vmem>>, vector<8x128xf32>
    %cst = arith.constant dense<0.000000e+00> : vector<8x128xf32>
    %5 = vector.multi_reduction <add>, %3, %cst [1] : vector<8x1x128xf32> to vector<8x128xf32>
    %6 = arith.addf %4, %5 : vector<8x128xf32>
    %c0_5 = arith.constant 0 : index
    %c0_6 = arith.constant 0 : index
    %7 = vector.load %arg6[%c0_5, %c0_6] : memref<8x128xf32, #tpu.memory_space<vmem>>, vector<8x128xf32>
    tpu.vector_store %arg6[%c0_5, %c0_6], %6 {strides = array<i32>} : memref<8x128xf32, #tpu.memory_space<vmem>>, vector<8x128xf32>,
    %c0_i32_7 = arith.constant 0 : i32
    %8 = arith.cmpi eq, %arg1, %c0_i32_7 : i32
    %9 = arith.extui %8 : i1 to i32
    %c0_i32_8 = arith.constant 0 : i32
    %10 = arith.cmpi ne, %9, %c0_i32_8 : i32
    scf.if %10 {
      %c0_9 = arith.constant 0 : index
      %c0_10 = arith.constant 0 : index
      %11 = vector.load %arg6[%c0_9, %c0_10] : memref<8x128xf32, #tpu.memory_space<vmem>>, vector<8x128xf32>
      %cst_11 = arith.constant 1.250000e-01 : f32
      %12 = vector.broadcast %cst_11 : f32 to vector<8x128xf32>
      %13 = arith.mulf %11, %12 : vector<8x128xf32>
      %c0_12 = arith.constant 0 : index
      %c0_13 = arith.constant 0 : index
      %14 = vector.load %arg3[%c0_12, %c0_13] : memref<128x128xf32, #tpu.memory_space<vmem>>, vector<128x128xf32>
      %cst_14 = arith.constant dense<0.000000e+00> : vector<8x128xf32>
      %15 = tpu.matmul %13, %14, %cst_14 {dimension_numbers = #tpu.dot_dimension_numbers<[1], [0], [0], [1], [0, 0, 1, 1], [], []>} : vector<8x128xf32>, vector<128x128xf32>, vector<8x128xf32> -> vector<8x128xf32>
      %c0_15 = arith.constant 0 : index
      %c0_16 = arith.constant 0 : index
      %16 = vector.load %arg4[%c0_15, %c0_16] : memref<1x128xf32, #tpu.memory_space<vmem>>, vector<1x128xf32>
      %17 = vector.broadcast %16 : vector<1x128xf32> to vector<8x128xf32>
      %18 = arith.addf %15, %17 : vector<8x128xf32>
      %cst_17 = arith.constant dense<0xFF800000> : vector<8xf32>
      %19 = vector.multi_reduction <maximumf>, %18, %cst_17 [1] : vector<8x128xf32> to vector<8xf32>
      %20 = vector.shape_cast %19 : vector<8xf32> to vector<8x1xf32>
      %21 = vector.broadcast %20 : vector<8x1xf32> to vector<8x128xf32>
      %22 = arith.subf %18, %21 : vector<8x128xf32>
      %23 = math.exp %22 : vector<8x128xf32>
      %cst_18 = arith.constant dense<0.000000e+00> : vector<8xf32>
      %24 = vector.multi_reduction <add>, %23, %cst_18 [1] : vector<8x128xf32> to vector<8xf32>
      %25 = vector.shape_cast %24 : vector<8xf32> to vector<8x1xf32>
      %cst_19 = arith.constant 1.000000e+00 : f32
      %26 = vector.broadcast %cst_19 : f32 to vector<8x1xf32>
      %27 = arith.divf %26, %25 : vector<8x1xf32>
      %28 = vector.broadcast %27 : vector<8x1xf32> to vector<8x128xf32>
      %29 = arith.mulf %23, %28 : vector<8x128xf32>
      %c0_20 = arith.constant 0 : index
      %c0_21 = arith.constant 0 : index
      %30 = vector.load %arg5[%c0_20, %c0_21] : memref<8x128xf32, #tpu.memory_space<vmem>>, vector<8x128xf32>
      tpu.vector_store %arg5[%c0_20, %c0_21], %29 {strides = array<i32>} : memref<8x128xf32, #tpu.memory_space<vmem>>, vector<8x128xf32>,
    } else {
    }
    return
  }
  func.func @transform_0(%arg0: i32, %arg1: i32) -> (i32, i32, i32) {
    %c0_i32 = arith.constant 0 : i32
    %c0_i32_0 = arith.constant 0 : i32
    return %arg0, %arg1, %c0_i32 : i32, i32, i32
  }
  func.func @transform_1(%arg0: i32, %arg1: i32) -> (i32, i32) {
    %c0_i32 = arith.constant 0 : i32
    %c0_i32_0 = arith.constant 0 : i32
    %c0_i32_1 = arith.constant 0 : i32
    return %c0_i32, %c0_i32_0 : i32, i32
  }
  func.func @transform_2(%arg0: i32, %arg1: i32) -> (i32, i32) {
    %c0_i32 = arith.constant 0 : i32
    %c0_i32_0 = arith.constant 0 : i32
    %c0_i32_1 = arith.constant 0 : i32
    return %c0_i32, %c0_i32_0 : i32, i32
  }
  func.func @transform_3(%arg0: i32, %arg1: i32) -> (i32, i32) {
    %c0_i32 = arith.constant 0 : i32
    %c0_i32_0 = arith.constant 0 : i32
    return %arg0, %c0_i32 : i32, i32
  }
}

</mosaic_0001>

<llo_original>
// kernel: gate_forward_prepared.1
$region0: #{gate_forward_prepared.1}
  #allocation0 [shape = 'u32[]', space=smem, size = 0x4, offset = 0x4, fixed_abs, tag = 'smem constant byte address 0x4 - core index']
  #allocation1 [shape = 'u32[72,128]{1,0:T(1,128)}', space=vmem, size = 0x9000, scoped, tag = 'internal scratch']
  #allocation2 [shape = 'f32[8,128]{1,0:T(8,128)}', space=vmem, size = 0x1000, scoped, tag = 'scratch operand']
  %s0 = inlined_call_operand.vmem [shape: f32[2,1,128], index: 0, kind: input, shape index: {}]
  %s1 = inlined_call_operand.vmem [shape: f32[128,128], index: 1, kind: input, shape index: {}]
  %s2 = inlined_call_operand.vmem [shape: f32[1,128], index: 2, kind: input, shape index: {}]
  %s3 = inlined_call_operand.hbm [shape: f32[2,128], index: 3, kind: output, shape index: {}]
  %s4 = sld [smem:[#allocation0]]
  $region30: #{gate_forward_prepared.1} parent=0
    _
  %s6 = ssub.s32 1, %s4
  %s7 = scalar_select 0, %s6, %s4
  $region1: #{gate_forward_prepared.1} parent=0
    #allocation3 [shape = 'u8[4096]{0}', space=vmem, size = 0x1000, scoped, tag = 'output window, operand 0, single buffered']
    #allocation4 [shape = 's32[1]{0}', space=sflag, size = 0x4, scoped, tag = 'scoped memory for gate_forward_prepared.1']
    %8 = vsyncpa [#allocation4], 0
    // Predicated region
    $region2: #{gate_forward_prepared.1} parent=1 // pred_check
      _
    $region3: #{gate_forward_prepared.1} parent=1 // pred_check_branch
      %10 = sbr.rel (0) target = $region5
    $region4: #{gate_forward_prepared.1} parent=1 // pred_region
      _
    $region5: #{gate_forward_prepared.1} parent=1 // pred_fallthru
      _
    // Predicated region
    $region6: #{gate_forward_prepared.1} parent=1 // pred_check
      _
    $region7: #{gate_forward_prepared.1} parent=1 // pred_check_branch
      %12 = sbr.rel (0) target = $region9
    $region8: #{gate_forward_prepared.1} parent=1 // pred_region
      _
    $region9: #{gate_forward_prepared.1} parent=1 // pred_fallthru
      _
    // Predicated region
    $region10: #{gate_forward_prepared.1} parent=1 // pred_check
      _
    $region11: #{gate_forward_prepared.1} parent=1 // pred_check_branch
      %14 = sbr.rel (0) target = $region13
    $region12: #{gate_forward_prepared.1} parent=1 // pred_region
      _
    $region13: #{gate_forward_prepared.1} parent=1 // pred_fallthru
      _
    %p15 = scmp.eq.s32.totalorder 0, 0
    // Predicated region
    $region14: #{gate_forward_prepared.1} parent=1 // pred_check
      %p16 = pneg %p15
    $region15: #{gate_forward_prepared.1} parent=1 // pred_check_branch
      %18 = sbr.rel (%p16) target = $region17
    $region16: #{gate_forward_prepared.1} parent=1 // pred_region
      %19 = vst [vmem:[#allocation2] sm:$0xff] 0.0
    $region17: #{gate_forward_prepared.1} parent=1 // pred_fallthru
      _
    %v20 = vld [vmem:[%s0] sm:$0x1]
    %v21 = vld [vmem:[%s0 + $0x1] sm:$0x1]
    %v22 = vld [vmem:[%s0 + $0x2] sm:$0x1]
    %v23 = vld [vmem:[%s0 + $0x3] sm:$0x1]
    %v24 = vld [vmem:[%s0 + $0x4] sm:$0x1]
    %v25 = vld [vmem:[%s0 + $0x5] sm:$0x1]
    %v26 = vld [vmem:[%s0 + $0x6] sm:$0x1]
    %v27 = vld [vmem:[%s0 + $0x7] sm:$0x1]
    %v28 = vld [vmem:[#allocation2] sm:$0xff]
    %v29 = vadd.f32 %v20, 0.0
    %v30 = vadd.f32 %v21, 0.0
    %v31 = vadd.f32 %v22, 0.0
    %v32 = vadd.f32 %v23, 0.0
    %v33 = vadd.f32 %v24, 0.0
    %v34 = vadd.f32 %v25, 0.0
    %v35 = vadd.f32 %v26, 0.0
    %v36 = vadd.f32 %v27, 0.0
    %45 = vst [vmem:[#allocation1] ss:$9 sm:$0xff] %v29
    %s46 = scalar_lea.vmem [#allocation1], 1
    %47 = vst [vmem:[%s46] ss:$9 sm:$0xff] %v30
    %s48 = scalar_lea.vmem [#allocation1], 2
    %49 = vst [vmem:[%s48] ss:$9 sm:$0xff] %v31
    %s50 = scalar_lea.vmem [#allocation1], 3
    %51 = vst [vmem:[%s50] ss:$9 sm:$0xff] %v32
    %s52 = scalar_lea.vmem [#allocation1], 4
    %53 = vst [vmem:[%s52] ss:$9 sm:$0xff] %v33
    %s54 = scalar_lea.vmem [#allocation1], 5
    %55 = vst [vmem:[%s54] ss:$9 sm:$0xff] %v34
    %s56 = scalar_lea.vmem [#allocation1], 6
    %57 = vst [vmem:[%s56] ss:$9 sm:$0xff] %v35
    %s58 = scalar_lea.vmem [#allocation1], 7
    %59 = vst [vmem:[%s58] ss:$9 sm:$0xff] %v36
    %v60 = vld [vmem:[#allocation1] sm:$0xff]
    %v62 = vadd.f32 %v28, %v60
    %63 = vst [vmem:[#allocation2] sm:$0xff] %v62
    // Predicated region
    $region18: #{gate_forward_prepared.1} parent=1 // pred_check
      %p64 = pneg %p15
    $region19: #{gate_forward_prepared.1} parent=1 // pred_check_branch
      %66 = sbr.rel (%p64) target = $region21
    $region20: #{gate_forward_prepared.1} parent=1 // pred_region
      %v67 = vld [vmem:[#allocation2] sm:$0xff]
      %v68 = vmul.f32 %v67, 0.125
      %v69 = vld [vmem:[%s1] sm:$0xff]
      %v70 = vld [vmem:[%s1 + $0x8] sm:$0xff]
      %v71 = vld [vmem:[%s1 + $0x10] sm:$0xff]
      %v72 = vld [vmem:[%s1 + $0x18] sm:$0xff]
      %v73 = vld [vmem:[%s1 + $0x20] sm:$0xff]
      %v74 = vld [vmem:[%s1 + $0x28] sm:$0xff]
      %v75 = vld [vmem:[%s1 + $0x30] sm:$0xff]
      %v76 = vld [vmem:[%s1 + $0x38] sm:$0xff]
      %v77 = vld [vmem:[%s1 + $0x40] sm:$0xff]
      %v78 = vld [vmem:[%s1 + $0x48] sm:$0xff]
      %v79 = vld [vmem:[%s1 + $0x50] sm:$0xff]
      %v80 = vld [vmem:[%s1 + $0x58] sm:$0xff]
      %v81 = vld [vmem:[%s1 + $0x60] sm:$0xff]
      %v82 = vld [vmem:[%s1 + $0x68] sm:$0xff]
      %v83 = vld [vmem:[%s1 + $0x70] sm:$0xff]
      %v84 = vld [vmem:[%s1 + $0x78] sm:$0xff]
      %v85 = vld [vmem:[%s2] sm:$0x1]
      %v87 = vperm.slane %v85, 0
      %89 = vmatpush.msra.mxu0 %v84
      %90 = vmatpush.msra.mxu0 %v83
      %91 = vmatpush.msra.mxu0 %v82
      %92 = vmatpush.msra.mxu0 %v81
      %93 = vmatpush.msra.mxu0 %v80
      %94 = vmatpush.msra.mxu0 %v79
      %95 = vmatpush.msra.mxu0 %v78
      %96 = vmatpush.msra.mxu0 %v77
      %97 = vmatpush.msra.mxu0 %v76
      %98 = vmatpush.msra.mxu0 %v75
      %99 = vmatpush.msra.mxu0 %v74
      %100 = vmatpush.msra.mxu0 %v73
      %101 = vmatpush.msra.mxu0 %v72
      %102 = vmatpush.msra.mxu0 %v71
      %103 = vmatpush.msra.mxu0 %v70
      %104 = vmatpush.msra.mxu0 %v69
      %105 = vmatmul.f32.gmra.mxu0 %v68
      %v106 = vpop.f32.mrf.mxu0
      %v107 = vadd.f32 %v87, %v106
      %108 = vdwg.mxu0
      %109 = vmax.xlane.f32.xlu0 %v107
      %v110 = vpop.xlane.xlu0 %109
      %v111 = vsub.f32 %v107, %v110
      %v112 = vmul.f32 %v111, 1.442695
      %v113 = vpow.pop %v112
      %114 = vadd.xlane.f32.xlu0 %v113
      %v115 = vpop.xlane.xlu0 %114
      %v116 = vrcp.pop %v115
      %v117 = vmul.f32 %v115, %v116
      %v118 = vsub.f32 1.0, %v117
      %v119 = vmul.f32 %v116, %v118
      %v120 = vadd.f32 %v116, %v119
      %vm121 = vweird.f32 %v115
      %vm122 = vweird.f32 %v116
      %vm123 = vmor %vm121, %vm122
      %v124 = vsel %vm123, %v116, %v120
      %v125 = vand.u32 2147483647, %v115
      %vm126 = vcmp.eq.f32.partialorder %v125, 8.507059e+37
      %v127 = vand.u32 %v115, 2147483648
      %v128 = vor.u32 1.1754944e-38, %v127
      %v129 = vsel %vm126, %v128, %v124
      %v130 = vmul.f32 1.0, %v129
      %v131 = vmul.f32 %v113, %v130
      %132 = vst [vmem:[#allocation3] sm:$0xff] %v131
    $region21: #{gate_forward_prepared.1} parent=1 // pred_fallthru
      _
    // Predicated region
    $region22: #{gate_forward_prepared.1} parent=1 // pred_check
      _
    $region23: #{gate_forward_prepared.1} parent=1 // pred_check_branch
      %134 = sbr.rel (0) target = $region25
    $region24: #{gate_forward_prepared.1} parent=1 // pred_region
      %136 = vsyncadd [#allocation4], 96
      %s137 = sshll.u32 [#allocation3], 4
      %s138 = int_to_ptr.vmem [resolvable:$true] %s137
      %s139 = sshll.u32 %s3, 4
      %s140 = int_to_ptr.hbm [resolvable:$true] %s139
      %145 = dma.vmem_to_hbm [thread:$0]  %s138, 32, %s140, [#allocation4], 32, 32, 2
    $region25: #{gate_forward_prepared.1} parent=1 // pred_fallthru
      _
    // Predicated region
    $region26: #{gate_forward_prepared.1} parent=1 // pred_check
      _
    $region27: #{gate_forward_prepared.1} parent=1 // pred_check_branch
      %147 = sbr.rel (0) target = $region29
    $region28: #{gate_forward_prepared.1} parent=1 // pred_region
      %149 = dma.done [#allocation4], 128
    $region29: #{gate_forward_prepared.1} parent=1 // pred_fallthru
      _
    %150 = vsyncpa [#allocation4], 1

</llo_original>
